<compile_context>
chip_gen: v7x
topology: tpu7x:2x2x1
jax: 0.10.0
libtpu: 0.0.40
codegen_flags: <defaults>
</compile_context>

<pallas_src>
import jax
import jax.numpy as jnp
from jax.experimental import pallas as pl
from jax.experimental.pallas import tpu as pltpu

EPS = 1e-5


def _pick_spatial_tile(p, target=8192):
    """Return (tile, padded_p).

    Whole spatial extent if small; else the largest multiple of 128 <= target that
    divides p; else a bounded tile of `target` lanes with p padded up to a multiple
    (padding is exact for the bias-free stats and sliced off after pass 2)."""
    if p <= target:
        return p, p
    t = (target // 128) * 128
    while t >= 128:
        if p % t == 0:
            return t, p
        t -= 128
    t = (target // 128) * 128
    p_pad = ((p + t - 1) // t) * t
    return t, p_pad


def _stats_kernel(x_ref, w_ref, stats_ref):
    """Pass 1: per-(batch, channel) sum / sum-of-squares of the conv output.

    The 1x1 conv runs on the MXU; the lane reductions land on the XLU, so the pass
    is HBM-bound.  stats_ref is a (Cout, 2) accumulator resident across the spatial
    grid axis (one block per batch element)."""
    @pl.when(pl.program_id(1) == 0)
    def _():
        stats_ref[...] = jnp.zeros_like(stats_ref)

    y = jnp.dot(w_ref[...], x_ref[...], preferred_element_type=jnp.float32)  # (Cout, TP)
    stats_ref[:, 0:1] += jnp.sum(y, axis=1, keepdims=True)      # sum
    stats_ref[:, 1:2] += jnp.sum(y * y, axis=1, keepdims=True)  # sum of squares


def _conv_bn_relu_kernel(x_ref, wf_ref, shift_ref, o_ref):
    """Pass 2: BN-folded conv (MXU matmul) + shift + ReLU, lane-dense store."""
    y = jnp.dot(wf_ref[...], x_ref[...], preferred_element_type=jnp.float32)  # (Cout, TP)
    o_ref[...] = jnp.maximum(y + shift_ref[...], 0.0)


@jax.jit
def test_model_forward(x_nchw, conv_w, conv_b, bn_gamma, bn_beta):
    """Forward pass of TestModel: Conv2d(3,16,1,stride=2) -> BatchNorm2d(16) -> ReLU.

    x_nchw: (N, 3, H, W) f32; conv_w: (16, 3, 1, 1) OIHW; conv_b/gamma/beta: (16,)
    returns (N, 16, ceil(H/2), ceil(W/2)) f32 in NCHW (PyTorch training-mode BN stats).
    """
    n, cin, h, w = x_nchw.shape
    cout = conv_w.shape[0]
    ho = (h + 1) // 2
    wo = (w + 1) // 2
    p = ho * wo

    # Stride-2 on a 1x1 conv == spatial subsampling: one strided slice in NCHW, then a
    # free reshape so Cin sits in sublanes and Ho*Wo is lane-dense.
    x2 = x_nchw[:, :, ::2, ::2].reshape(n, cin, p)        # (N, Cin, P)
    w2 = conv_w.reshape(cout, cin)                        # (Cout, Cin)
    del conv_b  # exactly cancelled by training-mode BN mean subtraction

    tp, p_pad = _pick_spatial_tile(p)
    if p_pad != p:
        # Zero padding is exact: bias-free conv of zeros contributes 0 to sum/sumsq,
        # and the padded output columns are sliced off below.
        x2 = jnp.pad(x2, ((0, 0), (0, 0), (0, p_pad - p)))
    grid = (n, p_pad // tp)

    # ---- Pass 1: per-batch partial BN statistics (megacore-friendly). ----
    partial_stats = pl.pallas_call(
        _stats_kernel,
        out_shape=jax.ShapeDtypeStruct((n, cout, 2), jnp.float32),
        grid=grid,
        in_specs=[
            pl.BlockSpec((None, cin, tp), lambda ni, pi: (ni, 0, pi)),
            pl.BlockSpec((cout, cin), lambda ni, pi: (0, 0)),
        ],
        out_specs=pl.BlockSpec((None, cout, 2), lambda ni, pi: (ni, 0, 0)),
        compiler_params=pltpu.CompilerParams(
            dimension_semantics=("parallel", "arbitrary")),
    )(x2, w2)

    # ---- Tiny XLA epilogue: fold BN into the conv weights (16-channel math). ----
    stats = jnp.sum(partial_stats, axis=0)                # (Cout, 2)
    inv_count = 1.0 / float(n * p)                        # true element count (no pad)
    mean = stats[:, 0] * inv_count
    var = jnp.maximum(stats[:, 1] * inv_count - mean * mean, 0.0)
    scale = bn_gamma * jax.lax.rsqrt(var + EPS)           # gamma * rsqrt(var+eps)
    shift = (bn_beta - mean * scale)[:, None]             # (Cout, 1)
    w_folded = scale[:, None] * w2                        # (Cout, Cin)

    # ---- Pass 2: folded conv (MXU) + shift + ReLU, fully parallel grid. ----
    out2 = pl.pallas_call(
        _conv_bn_relu_kernel,
        out_shape=jax.ShapeDtypeStruct((n, cout, p_pad), jnp.float32),
        grid=grid,
        in_specs=[
            pl.BlockSpec((None, cin, tp), lambda ni, pi: (ni, 0, pi)),
            pl.BlockSpec((cout, cin), lambda ni, pi: (0, 0)),
            pl.BlockSpec((cout, 1), lambda ni, pi: (0, 0)),
        ],
        out_specs=pl.BlockSpec((None, cout, tp), lambda ni, pi: (ni, 0, pi)),
        compiler_params=pltpu.CompilerParams(
            dimension_semantics=("parallel", "parallel")),
    )(x2, w_folded, shift)

    if p_pad != p:
        out2 = out2[:, :, :p]
    return out2.reshape(n, cout, ho, wo)                  # free reshape back to NCHW


def _reference_forward(x, conv_w, conv_b, gamma, beta):
    """Pure-JAX reference matching PyTorch training-mode semantics (exact f32 conv)."""
    xs = x[:, :, ::2, ::2]
    w2 = conv_w.reshape(conv_w.shape[0], conv_w.shape[1])
    # Elementwise conv (no MXU) so the check isolates kernel error.
    y = jnp.sum(w2[None, :, :, None, None] * xs[:, None, :, :, :], axis=2)
    y = y + conv_b[None, :, None, None]
    mean = jnp.mean(y, axis=(0, 2, 3), keepdims=True)
    var = jnp.mean((y - mean) ** 2, axis=(0, 2, 3), keepdims=True)
    yn = (y - mean) * jax.lax.rsqrt(var + EPS)
    return jnp.maximum(yn * gamma[None, :, None, None] + beta[None, :, None, None], 0.0)


if __name__ == "__main__":
    key = jax.random.PRNGKey(0)
    k_x, k_w, k_b, k_g, k_be = jax.random.split(key, 5)

    # Small shapes: batch=2, Cin=3 (module requirement), spatial 16x16.
    x = jax.random.normal(k_x, (2, 3, 16, 16), dtype=jnp.float32)
    conv_w = jax.random.normal(k_w, (16, 3, 1, 1), dtype=jnp.float32) * 0.1
    conv_b = jax.random.normal(k_b, (16,), dtype=jnp.float32) * 0.1
    bn_gamma = 1.0 + 0.05 * jax.random.normal(k_g, (16,), dtype=jnp.float32)
    bn_beta = 0.05 * jax.random.normal(k_be, (16,), dtype=jnp.float32)

    out = test_model_forward(x, conv_w, conv_b, bn_gamma, bn_beta)
    jax.block_until_ready(out)
    assert out.shape == (2, 16, 8, 8), out.shape

    ref = _reference_forward(x, conv_w, conv_b, bn_gamma, bn_beta)
    max_err = float(jnp.max(jnp.abs(out - ref)))
    assert max_err < 1e-3, f"max abs error vs reference: {max_err}"

    print("KERNEL_OK")
</pallas_src>

<mosaic_0001>
module attributes {stable_mosaic.version = 11 : i64} {
  func.func @_stats_kernel(%arg0: i32, %arg1: i32, %arg2: memref<1x3x64xf32, #tpu.memory_space<vmem>>, %arg3: memref<16x3xf32, #tpu.memory_space<vmem>>, %arg4: memref<1x16x2xf32, #tpu.memory_space<vmem>>) attributes {dimension_semantics = [#tpu.dimension_semantics<parallel>, #tpu.dimension_semantics<arbitrary>], iteration_bounds = array<i64: 2, 1>, scalar_prefetch = 0 : i64, scratch_operands = 0 : i64, tpu.core_type = #tpu.core_type<tc>, window_params = [{transform_indices = @transform_0, window_bounds = array<i64: 1, 3, 64>}, {pipeline_mode = #tpu.pipeline_mode<synchronous>, transform_indices = @transform_1, window_bounds = array<i64: 16, 3>}, {transform_indices = @transform_2, window_bounds = array<i64: 1, 16, 2>}]} {
    %c0_i32 = arith.constant 0 : i32
    %0 = arith.cmpi eq, %arg1, %c0_i32 : i32
    %1 = arith.extui %0 : i1 to i32
    %c0_i32_0 = arith.constant 0 : i32
    %2 = arith.cmpi ne, %1, %c0_i32_0 : i32
    scf.if %2 {
      %cst_18 = arith.constant 0.000000e+00 : f32
      %24 = vector.broadcast %cst_18 : f32 to vector<16x2xf32>
      %c0_19 = arith.constant 0 : index
      %c0_20 = arith.constant 0 : index
      %c0_21 = arith.constant 0 : index
      %25 = vector.load %arg4[%c0_19, %c0_20, %c0_21] : memref<1x16x2xf32, #tpu.memory_space<vmem>>, vector<1x16x2xf32>
      %26 = vector.shape_cast %25 : vector<1x16x2xf32> to vector<16x2xf32>
      %27 = vector.shape_cast %24 : vector<16x2xf32> to vector<1x16x2xf32>
      tpu.vector_store %arg4[%c0_19, %c0_20, %c0_21], %27 {strides = array<i32>} : memref<1x16x2xf32, #tpu.memory_space<vmem>>, vector<1x16x2xf32>,
    } else {
    }
    %c0 = arith.constant 0 : index
    %c0_1 = arith.constant 0 : index
    %3 = vector.load %arg3[%c0, %c0_1] : memref<16x3xf32, #tpu.memory_space<vmem>>, vector<16x3xf32>
    %c0_2 = arith.constant 0 : index
    %c0_3 = arith.constant 0 : index
    %c0_4 = arith.constant 0 : index
    %4 = vector.load %arg2[%c0_2, %c0_3, %c0_4] : memref<1x3x64xf32, #tpu.memory_space<vmem>>, vector<1x3x64xf32>
    %5 = vector.shape_cast %4 : vector<1x3x64xf32> to vector<3x64xf32>
    %cst = arith.constant dense<0.000000e+00> : vector<16x64xf32>
    %6 = tpu.matmul %3, %5, %cst {dimension_numbers = #tpu.dot_dimension_numbers<[1], [0], [0], [1], [0, 0, 1, 1], [], []>} : vector<16x3xf32>, vector<3x64xf32>, vector<16x64xf32> -> vector<16x64xf32>
    %c0_5 = arith.constant 0 : index
    %c0_6 = arith.constant 0 : index
    %c0_7 = arith.constant 0 : index
    %7 = vector.load %arg4[%c0_5, %c0_6, %c0_7] : memref<1x16x2xf32, #tpu.memory_space<vmem>>, vector<1x16x1xf32>
    %8 = vector.shape_cast %7 : vector<1x16x1xf32> to vector<16x1xf32>
    %cst_8 = arith.constant dense<0.000000e+00> : vector<16xf32>
    %9 = vector.multi_reduction <add>, %6, %cst_8 [1] : vector<16x64xf32> to vector<16xf32>
    %10 = vector.shape_cast %9 : vector<16xf32> to vector<16x1xf32>
    %11 = arith.addf %8, %10 : vector<16x1xf32>
    %c0_9 = arith.constant 0 : index
    %c0_10 = arith.constant 0 : index
    %c0_11 = arith.constant 0 : index
    %12 = vector.load %arg4[%c0_9, %c0_10, %c0_11] : memref<1x16x2xf32, #tpu.memory_space<vmem>>, vector<1x16x1xf32>
    %13 = vector.shape_cast %12 : vector<1x16x1xf32> to vector<16x1xf32>
    %14 = vector.shape_cast %11 : vector<16x1xf32> to vector<1x16x1xf32>
    tpu.vector_store %arg4[%c0_9, %c0_10, %c0_11], %14 {strides = array<i32>} : memref<1x16x2xf32, #tpu.memory_space<vmem>>, vector<1x16x1xf32>,
    %c0_12 = arith.constant 0 : index
    %c0_13 = arith.constant 0 : index
    %c1 = arith.constant 1 : index
    %15 = vector.load %arg4[%c0_12, %c0_13, %c1] : memref<1x16x2xf32, #tpu.memory_space<vmem>>, vector<1x16x1xf32>
    %16 = vector.shape_cast %15 : vector<1x16x1xf32> to vector<16x1xf32>
    %17 = arith.mulf %6, %6 : vector<16x64xf32>
    %cst_14 = arith.constant dense<0.000000e+00> : vector<16xf32>
    %18 = vector.multi_reduction <add>, %17, %cst_14 [1] : vector<16x64xf32> to vector<16xf32>
    %19 = vector.shape_cast %18 : vector<16xf32> to vector<16x1xf32>
    %20 = arith.addf %16, %19 : vector<16x1xf32>
    %c0_15 = arith.constant 0 : index
    %c0_16 = arith.constant 0 : index
    %c1_17 = arith.constant 1 : index
    %21 = vector.load %arg4[%c0_15, %c0_16, %c1_17] : memref<1x16x2xf32, #tpu.memory_space<vmem>>, vector<1x16x1xf32>
    %22 = vector.shape_cast %21 : vector<1x16x1xf32> to vector<16x1xf32>
    %23 = vector.shape_cast %20 : vector<16x1xf32> to vector<1x16x1xf32>
    tpu.vector_store %arg4[%c0_15, %c0_16, %c1_17], %23 {strides = array<i32>} : memref<1x16x2xf32, #tpu.memory_space<vmem>>, vector<1x16x1xf32>,
    return
  }
  func.func @transform_0(%arg0: i32, %arg1: i32) -> (i32, i32, i32) {
    %c0_i32 = arith.constant 0 : i32
    %c0_i32_0 = arith.constant 0 : i32
    return %arg0, %c0_i32, %arg1 : i32, i32, i32
  }
  func.func @transform_1(%arg0: i32, %arg1: i32) -> (i32, i32) {
    %c0_i32 = arith.constant 0 : i32
    %c0_i32_0 = arith.constant 0 : i32
    %c0_i32_1 = arith.constant 0 : i32
    return %c0_i32, %c0_i32_0 : i32, i32
  }
  func.func @transform_2(%arg0: i32, %arg1: i32) -> (i32, i32, i32) {
    %c0_i32 = arith.constant 0 : i32
    %c0_i32_0 = arith.constant 0 : i32
    %c0_i32_1 = arith.constant 0 : i32
    return %arg0, %c0_i32, %c0_i32_0 : i32, i32, i32
  }
}

module attributes {stable_mosaic.version = 11 : i64} {
  func.func @_conv_bn_relu_kernel(%arg0: i32, %arg1: i32, %arg2: memref<1x3x64xf32, #tpu.memory_space<vmem>>, %arg3: memref<16x3xf32, #tpu.memory_space<vmem>>, %arg4: memref<16x1xf32, #tpu.memory_space<vmem>>, %arg5: memref<1x16x64xf32, #tpu.memory_space<vmem>>) attributes {dimension_semantics = [#tpu.dimension_semantics<parallel>, #tpu.dimension_semantics<parallel>], iteration_bounds = array<i64: 2, 1>, scalar_prefetch = 0 : i64, scratch_operands = 0 : i64, tpu.core_type = #tpu.core_type<tc>, window_params = [{transform_indices = @transform_0, window_bounds = array<i64: 1, 3, 64>}, {pipeline_mode = #tpu.pipeline_mode<synchronous>, transform_indices = @transform_1, window_bounds = array<i64: 16, 3>}, {pipeline_mode = #tpu.pipeline_mode<synchronous>, transform_indices = @transform_2, window_bounds = array<i64: 16, 1>}, {transform_indices = @transform_3, window_bounds = array<i64: 1, 16, 64>}]} {
    %c0 = arith.constant 0 : index
    %c0_0 = arith.constant 0 : index
    %0 = vector.load %arg3[%c0, %c0_0] : memref<16x3xf32, #tpu.memory_space<vmem>>, vector<16x3xf32>
    %c0_1 = arith.constant 0 : index
    %c0_2 = arith.constant 0 : index
    %c0_3 = arith.constant 0 : index
    %1 = vector.load %arg2[%c0_1, %c0_2, %c0_3] : memref<1x3x64xf32, #tpu.memory_space<vmem>>, vector<1x3x64xf32>
    %2 = vector.shape_cast %1 : vector<1x3x64xf32> to vector<3x64xf32>
    %cst = arith.constant dense<0.000000e+00> : vector<16x64xf32>
    %3 = tpu.matmul %0, %2, %cst {dimension_numbers = #tpu.dot_dimension_numbers<[1], [0], [0], [1], [0, 0, 1, 1], [], []>} : vector<16x3xf32>, vector<3x64xf32>, vector<16x64xf32> -> vector<16x64xf32>
    %c0_4 = arith.constant 0 : index
    %c0_5 = arith.constant 0 : index
    %4 = vector.load %arg4[%c0_4, %c0_5] : memref<16x1xf32, #tpu.memory_space<vmem>>, vector<16x1xf32>
    %5 = vector.broadcast %4 : vector<16x1xf32> to vector<16x64xf32>
    %6 = arith.addf %3, %5 : vector<16x64xf32>
    %cst_6 = arith.constant 0.000000e+00 : f32
    %7 = vector.broadcast %cst_6 : f32 to vector<16x64xf32>
    %8 = arith.maximumf %6, %7 : vector<16x64xf32>
    %c0_7 = arith.constant 0 : index
    %c0_8 = arith.constant 0 : index
    %c0_9 = arith.constant 0 : index
    %9 = vector.load %arg5[%c0_7, %c0_8, %c0_9] : memref<1x16x64xf32, #tpu.memory_space<vmem>>, vector<1x16x64xf32>
    %10 = vector.shape_cast %9 : vector<1x16x64xf32> to vector<16x64xf32>
    %11 = vector.shape_cast %8 : vector<16x64xf32> to vector<1x16x64xf32>
    tpu.vector_store %arg5[%c0_7, %c0_8, %c0_9], %11 {strides = array<i32>} : memref<1x16x64xf32, #tpu.memory_space<vmem>>, vector<1x16x64xf32>,
    return
  }
  func.func @transform_0(%arg0: i32, %arg1: i32) -> (i32, i32, i32) {
    %c0_i32 = arith.constant 0 : i32
    %c0_i32_0 = arith.constant 0 : i32
    return %arg0, %c0_i32, %arg1 : i32, i32, i32
  }
  func.func @transform_1(%arg0: i32, %arg1: i32) -> (i32, i32) {
    %c0_i32 = arith.constant 0 : i32
    %c0_i32_0 = arith.constant 0 : i32
    %c0_i32_1 = arith.constant 0 : i32
    return %c0_i32, %c0_i32_0 : i32, i32
  }
  func.func @transform_2(%arg0: i32, %arg1: i32) -> (i32, i32) {
    %c0_i32 = arith.constant 0 : i32
    %c0_i32_0 = arith.constant 0 : i32
    %c0_i32_1 = arith.constant 0 : i32
    return %c0_i32, %c0_i32_0 : i32, i32
  }
  func.func @transform_3(%arg0: i32, %arg1: i32) -> (i32, i32, i32) {
    %c0_i32 = arith.constant 0 : i32
    %c0_i32_0 = arith.constant 0 : i32
    return %arg0, %c0_i32, %arg1 : i32, i32, i32
  }
}

</mosaic_0001>

<llo_original>
// kernel: test_model_forward.2
$region0: #{test_model_forward.2}
  #allocation0 [shape = 'u32[]', space=smem, size = 0x4, offset = 0x4, fixed_abs, tag = 'smem constant byte address 0x4 - core index']
  #allocation1 [shape = 'u32[144,128]{1,0:T(1,128)}', space=vmem, size = 0x12000, scoped, tag = 'internal scratch']
  %s0 = inlined_call_operand.vmem [shape: f32[2,3,64], index: 0, kind: input, shape index: {}]
  %s1 = inlined_call_operand.vmem [shape: f32[16,3], index: 1, kind: input, shape index: {}]
  %s2 = inlined_call_operand.vmem [shape: f32[2,16,2], index: 2, kind: output, shape index: {}]
  %s3 = sld [smem:[#allocation0]]
  $region45: #{test_model_forward.2} parent=0
    _
  %s5 = ssub.s32 1, %s3
  %s6 = scalar_select 0, %s5, %s3
  loop: start=0, step=1, limit=4
  $region2: #{test_model_forward.2} parent=0 // loop_pre_header
    _
  $region3: #{test_model_forward.2} parent=0 // loop_header
    %s8 = sphi 0, %s12
    %p9 = scmp.ge.s32.totalorder %s8, 4
    %s15 = sphi 0, %s27
    %s16 = sphi 0, %s23
    %s17 = sphi 0, %s15
    %s18 = sphi 0, %s16
    %s19 = sphi 0, %s17
    %s20 = sphi 0, %s18
    %s32 = sphi 0, %s34
    %s35 = sphi 0, %s32
    %s36 = sphi 0, %s35
    %s52 = sphi 0, %s36
    %s56 = sphi 0, %s56
    %s58 = sphi 0, %s56
    %s59 = sphi 0, %s58
    %s73 = sphi 0, %s59
    %s79 = sphi 0, %s81
    %s82 = sphi 0, %s79
    %s83 = sphi 0, %s82
    %s99 = sphi 0, %s83
  $region4: #{test_model_forward.2} parent=0 // loop_header_branch
    %11 = sbr.rel (%p9) target = $region8
  $region5: #{test_model_forward.2} parent=0 // loop_body
    %s13 = ssub.s32 %s8, 1
    %s14 = ssub.s32 %s8, 2
    %s21 = sadd.s32 1, %s16
    %p22 = scmp.ge.s32.totalorder %s21, 1
    %s23 = scalar_select %p22, 0, %s21
    %s24 = sadd.s32 1, %s15
    %s25 = scalar_select %p22, %s24, %s15
    %p26 = scmp.ge.s32.totalorder %s25, 2
    %s27 = scalar_select %p26, 0, %s25
    %s28 = ssub.s32 %s15, %s27
    %s29 = ssub.s32 %s16, %s23
    %s30 = sor.u32 %s28, %s29
    %p31 = scmp.eq.s32.totalorder %s30, 0
    %s33 = sadd.s32 %s32, 1
    %s34 = scalar_select %p31, %s32, %s33
    %p37 = pneg %p31
    %p38 = scmp.eq.s32.totalorder %s8, 1
    %p39 = por %p37, %p38
    %p40 = scmp.ne.s32.totalorder %s32, %s35
    %p41 = scmp.eq.s32.totalorder %s8, 0
    %p42 = por %p40, %p41
    %p43 = scmp.ne.s32.totalorder %s32, %s35
    %p44 = scmp.eq.s32.totalorder %s13, 1
    %p45 = por %p43, %p44
    %p46 = scmp.ne.s32.totalorder %s35, %s36
    %p47 = scmp.eq.s32.totalorder %s13, 0
    %p48 = por %p46, %p47
    %p49 = scmp.ne.s32.totalorder %s35, %s36
    %p50 = scmp.eq.s32.totalorder %s14, 1
    %p51 = por %p49, %p50
    %p53 = scmp.ne.s32.totalorder %s36, %s52
    %p54 = scmp.eq.s32.totalorder %s14, 0
    %p55 = por %p53, %p54
    %s57 = sadd.s32 %s56, 1
    %p60 = scmp.eq.s32.totalorder %s8, 1
    %p61 = scmp.ne.s32.totalorder %s56, %s58
    %p62 = scmp.eq.s32.totalorder %s8, 0
    %p63 = por %p61, %p62
    %p64 = scmp.ne.s32.totalorder %s56, %s58
    %p65 = scmp.eq.s32.totalorder %s13, 1
    %p66 = por %p64, %p65
    %p67 = scmp.ne.s32.totalorder %s58, %s59
    %p68 = scmp.eq.s32.totalorder %s13, 0
    %p69 = por %p67, %p68
    %p70 = scmp.ne.s32.totalorder %s58, %s59
    %p71 = scmp.eq.s32.totalorder %s14, 1
    %p72 = por %p70, %p71
    %p74 = scmp.ne.s32.totalorder %s59, %s73
    %p75 = scmp.eq.s32.totalorder %s14, 0
    %p76 = por %p74, %p75
    %s77 = ssub.s32 %s15, %s27
    %p78 = scmp.eq.s32.totalorder %s77, 0
    %s80 = sadd.s32 %s79, 1
    %s81 = scalar_select %p78, %s79, %s80
    %p84 = pneg %p78
    %p85 = scmp.eq.s32.totalorder %s8, 1
    %p86 = por %p84, %p85
    %p87 = scmp.ne.s32.totalorder %s79, %s82
    %p88 = scmp.eq.s32.totalorder %s8, 0
    %p89 = por %p87, %p88
    %p90 = scmp.ne.s32.totalorder %s79, %s82
    %p91 = scmp.eq.s32.totalorder %s13, 1
    %p92 = por %p90, %p91
    %p93 = scmp.ne.s32.totalorder %s82, %s83
    %p94 = scmp.eq.s32.totalorder %s13, 0
    %p95 = por %p93, %p94
    %p96 = scmp.ne.s32.totalorder %s82, %s83
    %p97 = scmp.eq.s32.totalorder %s14, 1
    %p98 = por %p96, %p97
    %p100 = scmp.ne.s32.totalorder %s83, %s99
    %p101 = scmp.eq.s32.totalorder %s14, 0
    %p102 = por %p100, %p101
    %p103 = scmp.le.s32.totalorder 1, %s8
    %p104 = scmp.lt.s32.totalorder %s8, 3
    %p105 = pnand %p103, %p104
    %p106 = pneg %p105
    // Predicated region
    $region9: #{test_model_forward.2} parent=5 // pred_check
      _
    $region10: #{test_model_forward.2} parent=5 // pred_check_branch
      %108 = sbr.rel (%p105) target = $region12
    $region11: #{test_model_forward.2} parent=5 // pred_region
      %s109 = ssub.s32 %s8, 1
      // Predicated region
      $region13: #{test_model_forward.2} parent=11 // pred_check
        %p110 = pneg %p69
      $region14: #{test_model_forward.2} parent=11 // pred_check_branch
        %112 = sbr.rel (%p110) target = $region16
      $region15: #{test_model_forward.2} parent=11 // pred_region
        _
      $region16: #{test_model_forward.2} parent=11 // pred_fallthru
        _
    $region12: #{test_model_forward.2} parent=5 // pred_fallthru
      _
    %p113 = scmp.lt.s32.totalorder %s8, 2
    // Predicated region
    $region17: #{test_model_forward.2} parent=5 // pred_check
      %p114 = pneg %p113
    $region18: #{test_model_forward.2} parent=5 // pred_check_branch
      %116 = sbr.rel (%p114) target = $region20
    $region19: #{test_model_forward.2} parent=5 // pred_region
      // Predicated region
      $region21: #{test_model_forward.2} parent=19 // pred_check
        %p117 = pneg %p42
      $region22: #{test_model_forward.2} parent=19 // pred_check_branch
        %119 = sbr.rel (%p117) target = $region24
      $region23: #{test_model_forward.2} parent=19 // pred_region
        %p120 = scmp.lt.s32.totalorder %s15, 1
        %s121 = scalar_select %p120, %s15, 1
        %p122 = scmp.lt.s32.totalorder %s16, 0
        %s123 = scalar_select %p122, %s16, 0
        %s124 = sadd.s32 %s123, %s121
        %s125 = smul.addr %s124, 4
        %s126 = scalar_lea.vmem %s0, %s125
      $region24: #{test_model_forward.2} parent=19 // pred_fallthru
        _
    $region20: #{test_model_forward.2} parent=5 // pred_fallthru
      _
    %p127 = scmp.le.s32.totalorder 1, %s8
    %p128 = scmp.lt.s32.totalorder %s8, 3
    %p129 = pnand %p127, %p128
    %p130 = pneg %p129
    // Predicated region
    $region25: #{test_model_forward.2} parent=5 // pred_check
      _
    $region26: #{test_model_forward.2} parent=5 // pred_check_branch
      %132 = sbr.rel (%p129) target = $region28
    $region27: #{test_model_forward.2} parent=5 // pred_region
      %s133 = ssub.s32 %s8, 1
      %p134 = scmp.lt.s32.totalorder %s17, 1
      %s135 = scalar_select %p134, %s17, 1
      %p136 = scmp.lt.s32.totalorder %s18, 0
      %s137 = scalar_select %p136, %s18, 0
      %s138 = sadd.s32 %s137, %s135
      %s139 = smul.addr %s138, 4
      %s140 = scalar_lea.vmem %s0, %s139
      %p141 = pneg %p48
      %p142 = pneg %p45
      %p143 = pneg %p69
      %p144 = pneg %p66
      %p145 = pneg %p95
      %p146 = pneg %p92
      %p147 = scmp.lt.s32.totalorder %s17, 1
      %s148 = scalar_select %p147, %s17, 1
      %s149 = smul.addr %s148, 2
      %s150 = smul.addr %s149, 8
      %s151 = scalar_lea.vmem %s2, %s150
      %p152 = scmp.lt.s32.totalorder %s17, 1
      %s153 = scalar_select %p152, %s17, 1
      %p154 = scmp.lt.s32.totalorder %s18, 0
      %s155 = scalar_select %p154, %s18, 0
      %s156 = sadd.s32 %s155, %s153
      %s157 = smul.addr %s156, 4
      %s158 = scalar_lea.vmem %s0, %s157
      %p159 = scmp.lt.s32.totalorder %s17, 1
      %s160 = scalar_select %p159, %s17, 1
      %s161 = smul.addr %s160, 2
      %s162 = smul.addr %s161, 8
      %s163 = scalar_lea.vmem %s2, %s162
      %p164 = scmp.eq.s32.totalorder %s18, 0
      // Predicated region
      $region29: #{test_model_forward.2} parent=27 // pred_check
        %p165 = pneg %p164
      $region30: #{test_model_forward.2} parent=27 // pred_check_branch
        %167 = sbr.rel (%p165) target = $region32
      $region31: #{test_model_forward.2} parent=27 // pred_region
        %vm168 = vcmask 15360
        %169 = vst.msk [vmem:[%s163] sm:$0xff] %vm168, 0.0
        %170 = vst.msk [vmem:[%s163 + $0x8] sm:$0xff] %vm168, 0.0
      $region32: #{test_model_forward.2} parent=27 // pred_fallthru
        _
      %v171 = vld [vmem:[%s1] sm:$0xff]
      %v172 = vld [vmem:[%s1 + $0x8] sm:$0xff]
      %v173 = vld [vmem:[%s158] sm:$0x7]
      %vm174 = vcmask 23552
      %v176 = vsel %vm174, %v171, 0
      %v179 = vsel %vm174, %v172, 0
      %vm181 = vcmask 1042432
      %v183 = vsel %vm181, %v173, 0
      %185 = vmatprep.subr.mxu0 0.0
      %186 = vmatpush1.msra.mxu0 %v183
      %187 = vmatprep.subr.mxu0 0.0
      %188 = vmatpush1.msra.mxu0 0.0
      %189 = vmatprep.subr.mxu0 0.0
      %190 = vmatpush1.msra.mxu0 0.0
      %191 = vmatprep.subr.mxu0 0.0
      %192 = vmatpush1.msra.mxu0 0.0
      %193 = vmatprep.subr.mxu0 0.0
      %194 = vmatpush1.msra.mxu0 0.0
      %195 = vmatprep.subr.mxu0 0.0
      %196 = vmatpush1.msra.mxu0 0.0
      %197 = vmatprep.subr.mxu0 0.0
      %198 = vmatpush1.msra.mxu0 0.0
      %199 = vmatprep.subr.mxu0 0.0
      %200 = vmatpush1.msra.mxu0 0.0
      %201 = vmatprep.subr.mxu0 0.0
      %202 = vmatpush1.msra.mxu0 0.0
      %203 = vmatprep.subr.mxu0 0.0
      %204 = vmatpush1.msra.mxu0 0.0
      %205 = vmatprep.subr.mxu0 0.0
      %206 = vmatpush1.msra.mxu0 0.0
      %207 = vmatprep.subr.mxu0 0.0
      %208 = vmatpush1.msra.mxu0 0.0
      %209 = vmatprep.subr.mxu0 0.0
      %210 = vmatpush1.msra.mxu0 0.0
      %211 = vmatprep.subr.mxu0 0.0
      %212 = vmatpush1.msra.mxu0 0.0
      %213 = vmatprep.subr.mxu0 0.0
      %214 = vmatpush1.msra.mxu0 0.0
      %215 = vmatprep.subr.mxu0 0.0
      %216 = vmatpush1.msra.mxu0 0.0
      %217 = vmatprep.subr.mxu0 0.0
      %218 = vmatpush1.msra.mxu0 0.0
      %219 = vmatprep.subr.mxu0 0.0
      %220 = vmatpush1.msra.mxu0 0.0
      %221 = vmatprep.subr.mxu0 0.0
      %222 = vmatpush1.msra.mxu0 0.0
      %223 = vmatprep.subr.mxu0 0.0
      %224 = vmatpush1.msra.mxu0 0.0
      %225 = vmatprep.subr.mxu0 0.0
      %226 = vmatpush1.msra.mxu0 0.0
      %227 = vmatprep.subr.mxu0 0.0
      %228 = vmatpush1.msra.mxu0 0.0
      %229 = vmatprep.subr.mxu0 0.0
      %230 = vmatpush1.msra.mxu0 0.0
      %231 = vmatprep.subr.mxu0 0.0
      %232 = vmatpush1.msra.mxu0 0.0
      %233 = vmatprep.subr.mxu0 0.0
      %234 = vmatpush1.msra.mxu0 0.0
      %235 = vmatprep.subr.mxu0 0.0
      %236 = vmatpush1.msra.mxu0 0.0
      %237 = vmatprep.subr.mxu0 0.0
      %238 = vmatpush1.msra.mxu0 0.0
      %239 = vmatprep.subr.mxu0 0.0
      %240 = vmatpush1.msra.mxu0 0.0
      %241 = vmatprep.subr.mxu0 0.0
      %242 = vmatpush1.msra.mxu0 0.0
      %243 = vmatprep.subr.mxu0 0.0
      %244 = vmatpush1.msra.mxu0 0.0
      %245 = vmatprep.subr.mxu0 0.0
      %246 = vmatpush1.msra.mxu0 0.0
      %247 = vmatprep.subr.mxu0 0.0
      %248 = vmatpush1.msra.mxu0 0.0
      %249 = vmatprep.mubr.f32.mxu0 0.0
      %250 = vmatmul.mubr.f32.gmra.mrb[0].mxu0 %v176
      %v251 = vpop.f32.mrb[0].mxu0
      %v252 = vadd.f32 0.0, %v251
      %v253 = vpop.f32.mrb[0].mxu0
      %254 = vmatprep.mubr.f32.mxu0 0.0
      %255 = vmatmul.mubr.f32.gmra.mrb[0].mxu0 %v179
      %v256 = vpop.f32.mrb[0].mxu0
      %v257 = vadd.f32 0.0, %v256
      %v258 = vpop.f32.mrb[0].mxu0
      %259 = vdwg.mxu0
      %v260 = vld [vmem:[%s163] sm:$0xff]
      %v261 = vld [vmem:[%s163 + $0x8] sm:$0xff]
      %vm262 = vcmask 523264
      %v263 = vsel %vm262, %v252, 0.0
      %264 = vadd.xlane.f32.xlu0 %v263
      %v265 = vpop.xlane.xlu0 %264
      %v266 = vsel %vm262, %v257, 0.0
      %267 = vadd.xlane.f32.xlu0 %v266
      %v268 = vpop.xlane.xlu0 %267
      %v269 = vadd.f32 %v260, %v265
      %v270 = vadd.f32 %v261, %v268
      %vm271 = vcmask 7168
      %272 = vst.msk [vmem:[%s163] sm:$0xff] %vm271, %v269
      %273 = vst.msk [vmem:[%s163 + $0x8] sm:$0xff] %vm271, %v270
      %v274 = vld [vmem:[%s163] sm:$0xff]
      %v275 = vld [vmem:[%s163 + $0x8] sm:$0xff]
      %v276 = vmul.f32 %v252, %v252
      %v277 = vmul.f32 %v257, %v257
      %v278 = vsel %vm262, %v276, 0.0
      %279 = vadd.xlane.f32.xlu0 %v278
      %v280 = vpop.xlane.xlu0 %279
      %v281 = vsel %vm262, %v277, 0.0
      %282 = vadd.xlane.f32.xlu0 %v281
      %v283 = vpop.xlane.xlu0 %282
      %v284 = vadd.f32 %v274, %v280
      %v285 = vadd.f32 %v275, %v283
      %vm286 = vcmask 15368
      %287 = vst.msk [vmem:[%s163] sm:$0xff] %vm286, %v284
      %288 = vst.msk [vmem:[%s163 + $0x8] sm:$0xff] %vm286, %v285
      %p289 = scmp.lt.s32.totalorder %s17, 1
      %s290 = scalar_select %p289, %s17, 1
      %s291 = smul.addr %s290, 2
      %s292 = smul.addr %s291, 8
      %s293 = scalar_lea.vmem %s2, %s292
      // Predicated region
      $region33: #{test_model_forward.2} parent=27 // pred_check
        %p294 = pneg %p92
      $region34: #{test_model_forward.2} parent=27 // pred_check_branch
        %296 = sbr.rel (%p294) target = $region36
      $region35: #{test_model_forward.2} parent=27 // pred_region
        _
      $region36: #{test_model_forward.2} parent=27 // pred_fallthru
        _
    $region28: #{test_model_forward.2} parent=5 // pred_fallthru
      _
    %p297 = scmp.le.s32.totalorder 2, %s8
    // Predicated region
    $region37: #{test_model_forward.2} parent=5 // pred_check
      %p298 = pneg %p297
    $region38: #{test_model_forward.2} parent=5 // pred_check_branch
      %300 = sbr.rel (%p298) target = $region40
    $region39: #{test_model_forward.2} parent=5 // pred_region
      %s301 = ssub.s32 %s8, 2
      // Predicated region
      $region41: #{test_model_forward.2} parent=39 // pred_check
        %p302 = pneg %p98
      $region42: #{test_model_forward.2} parent=39 // pred_check_branch
        %304 = sbr.rel (%p302) target = $region44
      $region43: #{test_model_forward.2} parent=39 // pred_region
        %p305 = scmp.lt.s32.totalorder %s19, 1
        %s306 = scalar_select %p305, %s19, 1
        %s307 = smul.addr %s306, 2
        %s308 = smul.addr %s307, 8
        %s309 = scalar_lea.vmem %s2, %s308
      $region44: #{test_model_forward.2} parent=39 // pred_fallthru
        _
    $region40: #{test_model_forward.2} parent=5 // pred_fallthru
      _
  $region6: #{test_model_forward.2} parent=0 // loop_footer
    %s12 = sadd.s32 1, %s8
  $region7: #{test_model_forward.2} parent=0 // loop_footer_branch
    %7 = sbr.rel target = $region3
  $region8: #{test_model_forward.2} parent=0 // loop_exit
    _

// kernel: test_model_forward.3
$region0: #{test_model_forward.3}
  #allocation0 [shape = 'u32[]', space=smem, size = 0x4, offset = 0x4, fixed_abs, tag = 'smem constant byte address 0x4 - core index']
  #allocation1 [shape = 'u32[144,128]{1,0:T(1,128)}', space=vmem, size = 0x12000, scoped, tag = 'internal scratch']
  %s0 = inlined_call_operand.vmem [shape: f32[2,3,64], index: 0, kind: input, shape index: {}]
  %s1 = inlined_call_operand.vmem [shape: f32[16,3], index: 1, kind: input, shape index: {}]
  %s2 = inlined_call_operand.vmem [shape: f32[16,1], index: 2, kind: input, shape index: {}]
  %s3 = inlined_call_operand.vmem [shape: f32[2,16,64], index: 3, kind: output, shape index: {}]
  %s4 = sld [smem:[#allocation0]]
  $region45: #{test_model_forward.3} parent=0
    _
  %s6 = ssub.s32 1, %s4
  %s7 = scalar_select 0, %s6, %s4
  loop: start=0, step=1, limit=4
  $region2: #{test_model_forward.3} parent=0 // loop_pre_header
    _
  $region3: #{test_model_forward.3} parent=0 // loop_header
    %s9 = sphi 0, %s13
    %p10 = scmp.ge.s32.totalorder %s9, 4
    %s16 = sphi 0, %s28
    %s17 = sphi 0, %s24
    %s18 = sphi 0, %s16
    %s19 = sphi 0, %s17
    %s20 = sphi 0, %s18
    %s21 = sphi 0, %s19
    %s33 = sphi 0, %s35
    %s36 = sphi 0, %s33
    %s37 = sphi 0, %s36
    %s53 = sphi 0, %s37
    %s57 = sphi 0, %s57
    %s59 = sphi 0, %s57
    %s60 = sphi 0, %s59
    %s74 = sphi 0, %s60
    %s78 = sphi 0, %s78
    %s80 = sphi 0, %s78
    %s81 = sphi 0, %s80
    %s95 = sphi 0, %s81
    %s103 = sphi 0, %s105
    %s106 = sphi 0, %s103
    %s107 = sphi 0, %s106
    %s123 = sphi 0, %s107
  $region4: #{test_model_forward.3} parent=0 // loop_header_branch
    %12 = sbr.rel (%p10) target = $region8
  $region5: #{test_model_forward.3} parent=0 // loop_body
    %s14 = ssub.s32 %s9, 1
    %s15 = ssub.s32 %s9, 2
    %s22 = sadd.s32 1, %s17
    %p23 = scmp.ge.s32.totalorder %s22, 1
    %s24 = scalar_select %p23, 0, %s22
    %s25 = sadd.s32 1, %s16
    %s26 = scalar_select %p23, %s25, %s16
    %p27 = scmp.ge.s32.totalorder %s26, 2
    %s28 = scalar_select %p27, 0, %s26
    %s29 = ssub.s32 %s16, %s28
    %s30 = ssub.s32 %s17, %s24
    %s31 = sor.u32 %s29, %s30
    %p32 = scmp.eq.s32.totalorder %s31, 0
    %s34 = sadd.s32 %s33, 1
    %s35 = scalar_select %p32, %s33, %s34
    %p38 = pneg %p32
    %p39 = scmp.eq.s32.totalorder %s9, 1
    %p40 = por %p38, %p39
    %p41 = scmp.ne.s32.totalorder %s33, %s36
    %p42 = scmp.eq.s32.totalorder %s9, 0
    %p43 = por %p41, %p42
    %p44 = scmp.ne.s32.totalorder %s33, %s36
    %p45 = scmp.eq.s32.totalorder %s14, 1
    %p46 = por %p44, %p45
    %p47 = scmp.ne.s32.totalorder %s36, %s37
    %p48 = scmp.eq.s32.totalorder %s14, 0
    %p49 = por %p47, %p48
    %p50 = scmp.ne.s32.totalorder %s36, %s37
    %p51 = scmp.eq.s32.totalorder %s15, 1
    %p52 = por %p50, %p51
    %p54 = scmp.ne.s32.totalorder %s37, %s53
    %p55 = scmp.eq.s32.totalorder %s15, 0
    %p56 = por %p54, %p55
    %s58 = sadd.s32 %s57, 1
    %p61 = scmp.eq.s32.totalorder %s9, 1
    %p62 = scmp.ne.s32.totalorder %s57, %s59
    %p63 = scmp.eq.s32.totalorder %s9, 0
    %p64 = por %p62, %p63
    %p65 = scmp.ne.s32.totalorder %s57, %s59
    %p66 = scmp.eq.s32.totalorder %s14, 1
    %p67 = por %p65, %p66
    %p68 = scmp.ne.s32.totalorder %s59, %s60
    %p69 = scmp.eq.s32.totalorder %s14, 0
    %p70 = por %p68, %p69
    %p71 = scmp.ne.s32.totalorder %s59, %s60
    %p72 = scmp.eq.s32.totalorder %s15, 1
    %p73 = por %p71, %p72
    %p75 = scmp.ne.s32.totalorder %s60, %s74
    %p76 = scmp.eq.s32.totalorder %s15, 0
    %p77 = por %p75, %p76
    %s79 = sadd.s32 %s78, 1
    %p82 = scmp.eq.s32.totalorder %s9, 1
    %p83 = scmp.ne.s32.totalorder %s78, %s80
    %p84 = scmp.eq.s32.totalorder %s9, 0
    %p85 = por %p83, %p84
    %p86 = scmp.ne.s32.totalorder %s78, %s80
    %p87 = scmp.eq.s32.totalorder %s14, 1
    %p88 = por %p86, %p87
    %p89 = scmp.ne.s32.totalorder %s80, %s81
    %p90 = scmp.eq.s32.totalorder %s14, 0
    %p91 = por %p89, %p90
    %p92 = scmp.ne.s32.totalorder %s80, %s81
    %p93 = scmp.eq.s32.totalorder %s15, 1
    %p94 = por %p92, %p93
    %p96 = scmp.ne.s32.totalorder %s81, %s95
    %p97 = scmp.eq.s32.totalorder %s15, 0
    %p98 = por %p96, %p97
    %s99 = ssub.s32 %s16, %s28
    %s100 = ssub.s32 %s17, %s24
    %s101 = sor.u32 %s99, %s100
    %p102 = scmp.eq.s32.totalorder %s101, 0
    %s104 = sadd.s32 %s103, 1
    %s105 = scalar_select %p102, %s103, %s104
    %p108 = pneg %p102
    %p109 = scmp.eq.s32.totalorder %s9, 1
    %p110 = por %p108, %p109
    %p111 = scmp.ne.s32.totalorder %s103, %s106
    %p112 = scmp.eq.s32.totalorder %s9, 0
    %p113 = por %p111, %p112
    %p114 = scmp.ne.s32.totalorder %s103, %s106
    %p115 = scmp.eq.s32.totalorder %s14, 1
    %p116 = por %p114, %p115
    %p117 = scmp.ne.s32.totalorder %s106, %s107
    %p118 = scmp.eq.s32.totalorder %s14, 0
    %p119 = por %p117, %p118
    %p120 = scmp.ne.s32.totalorder %s106, %s107
    %p121 = scmp.eq.s32.totalorder %s15, 1
    %p122 = por %p120, %p121
    %p124 = scmp.ne.s32.totalorder %s107, %s123
    %p125 = scmp.eq.s32.totalorder %s15, 0
    %p126 = por %p124, %p125
    %p127 = scmp.le.s32.totalorder 1, %s9
    %p128 = scmp.lt.s32.totalorder %s9, 3
    %p129 = pnand %p127, %p128
    %p130 = pneg %p129
    // Predicated region
    $region9: #{test_model_forward.3} parent=5 // pred_check
      _
    $region10: #{test_model_forward.3} parent=5 // pred_check_branch
      %132 = sbr.rel (%p129) target = $region12
    $region11: #{test_model_forward.3} parent=5 // pred_region
      %s133 = ssub.s32 %s9, 1
      // Predicated region
      $region13: #{test_model_forward.3} parent=11 // pred_check
        %p134 = pneg %p70
      $region14: #{test_model_forward.3} parent=11 // pred_check_branch
        %136 = sbr.rel (%p134) target = $region16
      $region15: #{test_model_forward.3} parent=11 // pred_region
        _
      $region16: #{test_model_forward.3} parent=11 // pred_fallthru
        _
      // Predicated region
      $region17: #{test_model_forward.3} parent=11 // pred_check
        %p137 = pneg %p91
      $region18: #{test_model_forward.3} parent=11 // pred_check_branch
        %139 = sbr.rel (%p137) target = $region20
      $region19: #{test_model_forward.3} parent=11 // pred_region
        _
      $region20: #{test_model_forward.3} parent=11 // pred_fallthru
        _
    $region12: #{test_model_forward.3} parent=5 // pred_fallthru
      _
    %p140 = scmp.lt.s32.totalorder %s9, 2
    // Predicated region
    $region21: #{test_model_forward.3} parent=5 // pred_check
      %p141 = pneg %p140
    $region22: #{test_model_forward.3} parent=5 // pred_check_branch
      %143 = sbr.rel (%p141) target = $region24
    $region23: #{test_model_forward.3} parent=5 // pred_region
      // Predicated region
      $region25: #{test_model_forward.3} parent=23 // pred_check
        %p144 = pneg %p43
      $region26: #{test_model_forward.3} parent=23 // pred_check_branch
        %146 = sbr.rel (%p144) target = $region28
      $region27: #{test_model_forward.3} parent=23 // pred_region
        %p147 = scmp.lt.s32.totalorder %s16, 1
        %s148 = scalar_select %p147, %s16, 1
        %p149 = scmp.lt.s32.totalorder %s17, 0
        %s150 = scalar_select %p149, %s17, 0
        %s151 = sadd.s32 %s150, %s148
        %s152 = smul.addr %s151, 4
        %s153 = scalar_lea.vmem %s0, %s152
      $region28: #{test_model_forward.3} parent=23 // pred_fallthru
        _
    $region24: #{test_model_forward.3} parent=5 // pred_fallthru
      _
    %p154 = scmp.le.s32.totalorder 1, %s9
    %p155 = scmp.lt.s32.totalorder %s9, 3
    %p156 = pnand %p154, %p155
    %p157 = pneg %p156
    // Predicated region
    $region29: #{test_model_forward.3} parent=5 // pred_check
      _
    $region30: #{test_model_forward.3} parent=5 // pred_check_branch
      %159 = sbr.rel (%p156) target = $region32
    $region31: #{test_model_forward.3} parent=5 // pred_region
      %s160 = ssub.s32 %s9, 1
      %p161 = scmp.lt.s32.totalorder %s18, 1
      %s162 = scalar_select %p161, %s18, 1
      %p163 = scmp.lt.s32.totalorder %s19, 0
      %s164 = scalar_select %p163, %s19, 0
      %s165 = sadd.s32 %s164, %s162
      %s166 = smul.addr %s165, 4
      %s167 = scalar_lea.vmem %s0, %s166
      %p168 = pneg %p49
      %p169 = pneg %p46
      %p170 = pneg %p70
      %p171 = pneg %p67
      %p172 = pneg %p91
      %p173 = pneg %p88
      %p174 = pneg %p119
      %p175 = pneg %p116
      %p176 = scmp.lt.s32.totalorder %s18, 1
      %s177 = scalar_select %p176, %s18, 1
      %p178 = scmp.lt.s32.totalorder %s19, 0
      %s179 = scalar_select %p178, %s19, 0
      %s180 = smul.addr %s177, 2
      %s181 = sadd.s32 %s179, %s180
      %s182 = smul.addr %s181, 8
      %s183 = scalar_lea.vmem %s3, %s182
      %p184 = scmp.lt.s32.totalorder %s18, 1
      %s185 = scalar_select %p184, %s18, 1
      %p186 = scmp.lt.s32.totalorder %s19, 0
      %s187 = scalar_select %p186, %s19, 0
      %s188 = sadd.s32 %s187, %s185
      %s189 = smul.addr %s188, 4
      %s190 = scalar_lea.vmem %s0, %s189
      %p191 = scmp.lt.s32.totalorder %s18, 1
      %s192 = scalar_select %p191, %s18, 1
      %p193 = scmp.lt.s32.totalorder %s19, 0
      %s194 = scalar_select %p193, %s19, 0
      %s195 = smul.addr %s192, 2
      %s196 = sadd.s32 %s194, %s195
      %s197 = smul.addr %s196, 8
      %s198 = scalar_lea.vmem %s3, %s197
      %v199 = vld [vmem:[%s1] sm:$0xff]
      %v200 = vld [vmem:[%s1 + $0x8] sm:$0xff]
      %v201 = vld [vmem:[%s190] sm:$0x7]
      %v202 = vld [vmem:[%s2] sm:$0xff]
      %v203 = vld [vmem:[%s2 + $0x8] sm:$0xff]
      %205 = vset.pattern.permute.xlu0 0
      %206 = vperm.xlu0 %205, %v202
      %v207 = vpop.permute.xlu0 %206
      %210 = vset.pattern.permute.xlu0 0
      %211 = vperm.xlu0 %210, %v203
      %v212 = vpop.permute.xlu0 %211
      %vm214 = vcmask 23552
      %v216 = vsel %vm214, %v199, 0
      %v219 = vsel %vm214, %v200, 0
      %vm221 = vcmask 1042432
      %v223 = vsel %vm221, %v201, 0
      %225 = vmatprep.subr.mxu0 0.0
      %226 = vmatpush1.msra.mxu0 %v223
      %227 = vmatprep.subr.mxu0 0.0
      %228 = vmatpush1.msra.mxu0 0.0
      %229 = vmatprep.subr.mxu0 0.0
      %230 = vmatpush1.msra.mxu0 0.0
      %231 = vmatprep.subr.mxu0 0.0
      %232 = vmatpush1.msra.mxu0 0.0
      %233 = vmatprep.subr.mxu0 0.0
      %234 = vmatpush1.msra.mxu0 0.0
      %235 = vmatprep.subr.mxu0 0.0
      %236 = vmatpush1.msra.mxu0 0.0
      %237 = vmatprep.subr.mxu0 0.0
      %238 = vmatpush1.msra.mxu0 0.0
      %239 = vmatprep.subr.mxu0 0.0
      %240 = vmatpush1.msra.mxu0 0.0
      %241 = vmatprep.subr.mxu0 0.0
      %242 = vmatpush1.msra.mxu0 0.0
      %243 = vmatprep.subr.mxu0 0.0
      %244 = vmatpush1.msra.mxu0 0.0
      %245 = vmatprep.subr.mxu0 0.0
      %246 = vmatpush1.msra.mxu0 0.0
      %247 = vmatprep.subr.mxu0 0.0
      %248 = vmatpush1.msra.mxu0 0.0
      %249 = vmatprep.subr.mxu0 0.0
      %250 = vmatpush1.msra.mxu0 0.0
      %251 = vmatprep.subr.mxu0 0.0
      %252 = vmatpush1.msra.mxu0 0.0
      %253 = vmatprep.subr.mxu0 0.0
      %254 = vmatpush1.msra.mxu0 0.0
      %255 = vmatprep.subr.mxu0 0.0
      %256 = vmatpush1.msra.mxu0 0.0
      %257 = vmatprep.subr.mxu0 0.0
      %258 = vmatpush1.msra.mxu0 0.0
      %259 = vmatprep.subr.mxu0 0.0
      %260 = vmatpush1.msra.mxu0 0.0
      %261 = vmatprep.subr.mxu0 0.0
      %262 = vmatpush1.msra.mxu0 0.0
      %263 = vmatprep.subr.mxu0 0.0
      %264 = vmatpush1.msra.mxu0 0.0
      %265 = vmatprep.subr.mxu0 0.0
      %266 = vmatpush1.msra.mxu0 0.0
      %267 = vmatprep.subr.mxu0 0.0
      %268 = vmatpush1.msra.mxu0 0.0
      %269 = vmatprep.subr.mxu0 0.0
      %270 = vmatpush1.msra.mxu0 0.0
      %271 = vmatprep.subr.mxu0 0.0
      %272 = vmatpush1.msra.mxu0 0.0
      %273 = vmatprep.subr.mxu0 0.0
      %274 = vmatpush1.msra.mxu0 0.0
      %275 = vmatprep.subr.mxu0 0.0
      %276 = vmatpush1.msra.mxu0 0.0
      %277 = vmatprep.subr.mxu0 0.0
      %278 = vmatpush1.msra.mxu0 0.0
      %279 = vmatprep.subr.mxu0 0.0
      %280 = vmatpush1.msra.mxu0 0.0
      %281 = vmatprep.subr.mxu0 0.0
      %282 = vmatpush1.msra.mxu0 0.0
      %283 = vmatprep.subr.mxu0 0.0
      %284 = vmatpush1.msra.mxu0 0.0
      %285 = vmatprep.subr.mxu0 0.0
      %286 = vmatpush1.msra.mxu0 0.0
      %287 = vmatprep.subr.mxu0 0.0
      %288 = vmatpush1.msra.mxu0 0.0
      %289 = vmatprep.mubr.f32.mxu0 0.0
      %290 = vmatmul.mubr.f32.gmra.mrb[0].mxu0 %v216
      %v291 = vpop.f32.mrb[0].mxu0
      %v292 = vadd.f32 %v207, %v291
      %v293 = vpop.f32.mrb[0].mxu0
      %294 = vmatprep.mubr.f32.mxu0 0.0
      %295 = vmatmul.mubr.f32.gmra.mrb[0].mxu0 %v219
      %v296 = vpop.f32.mrb[0].mxu0
      %v297 = vadd.f32 %v212, %v296
      %v298 = vpop.f32.mrb[0].mxu0
      %299 = vdwg.mxu0
      %v300 = vmax.f32 %v292, 0.0
      %v301 = vmax.f32 %v297, 0.0
      %vm302 = vcmask 523264
      %303 = vst.msk [vmem:[%s198] sm:$0xff] %vm302, %v300
      %304 = vst.msk [vmem:[%s198 + $0x8] sm:$0xff] %vm302, %v301
      %p305 = scmp.lt.s32.totalorder %s18, 1
      %s306 = scalar_select %p305, %s18, 1
      %p307 = scmp.lt.s32.totalorder %s19, 0
      %s308 = scalar_select %p307, %s19, 0
      %s309 = smul.addr %s306, 2
      %s310 = sadd.s32 %s308, %s309
      %s311 = smul.addr %s310, 8
      %s312 = scalar_lea.vmem %s3, %s311
      // Predicated region
      $region33: #{test_model_forward.3} parent=31 // pred_check
        %p313 = pneg %p116
      $region34: #{test_model_forward.3} parent=31 // pred_check_branch
        %315 = sbr.rel (%p313) target = $region36
      $region35: #{test_model_forward.3} parent=31 // pred_region
        _
      $region36: #{test_model_forward.3} parent=31 // pred_fallthru
        _
    $region32: #{test_model_forward.3} parent=5 // pred_fallthru
      _
    %p316 = scmp.le.s32.totalorder 2, %s9
    // Predicated region
    $region37: #{test_model_forward.3} parent=5 // pred_check
      %p317 = pneg %p316
    $region38: #{test_model_forward.3} parent=5 // pred_check_branch
      %319 = sbr.rel (%p317) target = $region40
    $region39: #{test_model_forward.3} parent=5 // pred_region
      %s320 = ssub.s32 %s9, 2
      // Predicated region
      $region41: #{test_model_forward.3} parent=39 // pred_check
        %p321 = pneg %p122
      $region42: #{test_model_forward.3} parent=39 // pred_check_branch
        %323 = sbr.rel (%p321) target = $region44
      $region43: #{test_model_forward.3} parent=39 // pred_region
        %p324 = scmp.lt.s32.totalorder %s20, 1
        %s325 = scalar_select %p324, %s20, 1
        %p326 = scmp.lt.s32.totalorder %s21, 0
        %s327 = scalar_select %p326, %s21, 0
        %s328 = smul.addr %s325, 2
        %s329 = sadd.s32 %s327, %s328
        %s330 = smul.addr %s329, 8
        %s331 = scalar_lea.vmem %s3, %s330
      $region44: #{test_model_forward.3} parent=39 // pred_fallthru
        _
    $region40: #{test_model_forward.3} parent=5 // pred_fallthru
      _
  $region6: #{test_model_forward.3} parent=0 // loop_footer
    %s13 = sadd.s32 1, %s9
  $region7: #{test_model_forward.3} parent=0 // loop_footer_branch
    %8 = sbr.rel target = $region3
  $region8: #{test_model_forward.3} parent=0 // loop_exit
    _

</llo_original>
